<compile_context>
chip_gen: v5e
topology: v5e:2x2
jax: 0.10.0
libtpu: 0.0.40
codegen_flags: <defaults>
</compile_context>

<pallas_src>
import functools

import jax
import jax.numpy as jnp
from jax import lax
from jax.experimental import pallas as pl
from jax.experimental.pallas import tpu as pltpu

_TK_MAX = 16384  # cap on the K (contraction) tile, in columns


def _round_up(x, m):
    return ((x + m - 1) // m) * m


def _cdiv(a, b):
    return -(-a // b)


def _detect_vmem_budget():
    """Scoped-VMEM budget from the actual chip (~0.65x physical VMEM), clamped
    to known per-core capacities so a bad query can never over-commit."""
    cap = None
    try:
        cap = getattr(pltpu.get_tpu_info(), "vmem_capacity_bytes", None)
    except Exception:
        cap = None
    if not cap:
        cap = 64 * 1024 * 1024                       # conservative: v7x per-core VMEM
    cap = min(max(int(cap), 64 * 1024 * 1024), 128 * 1024 * 1024)
    return int(cap * 0.65)


_VMEM_BUDGET_BYTES = _detect_vmem_budget()


def _choose_tk(ab, cd, feat_itemsize, resident_f32_ab2):
    """Largest K tile (multiple of 128) such that the double-buffered feature
    tile plus the resident (AB, AB) f32 buffers fit the VMEM budget."""
    # TODO(synk): add an output-tiled (i, j, k) fallback for very large AB
    # (>= ~2048) where the full (AB, AB) f32 accumulator no longer fits VMEM.
    fixed = resident_f32_ab2 * ab * ab * 4
    avail = int(_VMEM_BUDGET_BYTES * 0.8) - fixed    # compiler headroom
    max_tk = (avail // (2 * ab * feat_itemsize)) // 128 * 128
    max_tk = max(128, max_tk)
    return int(min(_TK_MAX, max_tk, _round_up(cd, 128)))


def _gram_dot(f):
    # Contract both operands along their last dim -> (AB, AB) f32 on the MXU,
    # without materializing a transpose of the wide (AB, tk) tile.
    return lax.dot_general(
        f, f,
        dimension_numbers=(((1,), (1,)), ((), ())),
        preferred_element_type=jnp.float32)


def _masked_tile(feat_ref, k_block, *, cd, tk, mask_cols):
    """Load the current feature tile; zero columns past CD (ragged tail and any
    fully out-of-range virtual block) with a select so OOB garbage can't leak."""
    f = feat_ref[...]
    if mask_cols:
        col = k_block * tk + lax.broadcasted_iota(jnp.int32, f.shape, 1)
        f = jnp.where(col < cd, f, jnp.zeros_like(f))
    return f


# --------------------------------------------------------------------------- #
# Kernels
# --------------------------------------------------------------------------- #
def _gram_partial_kernel(feat_ref, g_ref, *, inv_gram_denom, cd, tk, kpc, mask_cols):
    """grid = (k_splits, kpc): each split accumulates its share of the K
    reduction directly into its VMEM-resident (AB, AB) output block."""
    c = pl.program_id(0)
    k = pl.program_id(1)

    @pl.when(k == 0)
    def _():
        g_ref[...] = jnp.zeros_like(g_ref)

    f = _masked_tile(feat_ref, c * kpc + k, cd=cd, tk=tk, mask_cols=mask_cols)
    g_ref[...] += _gram_dot(f)

    @pl.when(k == pl.num_programs(1) - 1)
    def _():
        g_ref[...] *= inv_gram_denom


def _gram_mse_kernel(feat_ref, tgt_hbm, loss_ref, acc_ref, tgt_vmem, tgt_sem, *,
                     inv_gram_denom, inv_mse_denom, cd, tk, mask_cols):
    """Fused Gram + MSE: accumulate the Gram in VMEM, DMA the target Gram from
    HBM once (start at k==0, wait in the epilogue), emit only the scalar loss."""
    k = pl.program_id(0)
    tgt_cp = pltpu.make_async_copy(tgt_hbm, tgt_vmem, tgt_sem.at[0])

    @pl.when(k == 0)
    def _():
        acc_ref[...] = jnp.zeros_like(acc_ref)
        tgt_cp.start()

    f = _masked_tile(feat_ref, k, cd=cd, tk=tk, mask_cols=mask_cols)
    acc_ref[...] += _gram_dot(f)

    @pl.when(k == pl.num_programs(0) - 1)
    def _():
        tgt_cp.wait()
        diff = acc_ref[...] * inv_gram_denom - tgt_vmem[...]
        loss_ref[0] = jnp.sum(diff * diff) * inv_mse_denom


# --------------------------------------------------------------------------- #
# pallas_call wrappers
# --------------------------------------------------------------------------- #
def _gram_partials_pallas(feats, gram_denom, *, tk=None, k_splits=1):
    """feats: (AB, CD) -> (k_splits, AB, AB) f32 partial Grams (already scaled
    by 1/gram_denom); summing over axis 0 gives the full Gram matrix."""
    ab, cd = feats.shape
    if tk is None:
        tk = _choose_tk(ab, cd, feats.dtype.itemsize, resident_f32_ab2=2)
    kt_total = _cdiv(cd, tk)
    k_splits = max(1, min(int(k_splits), kt_total))
    kpc = _cdiv(kt_total, k_splits)                  # K blocks per split
    mask_cols = (cd % tk != 0) or (kpc * k_splits != kt_total)

    kernel = functools.partial(
        _gram_partial_kernel,
        inv_gram_denom=1.0 / float(gram_denom),
        cd=cd, tk=tk, kpc=kpc, mask_cols=mask_cols)

    def feat_map(c, k):
        # Clamp virtual K blocks past the array (they are fully masked anyway)
        # so the pipelined DMA never reads outside the feature matrix.
        return (0, jnp.minimum(c * kpc + k, kt_total - 1))

    return pl.pallas_call(
        kernel,
        out_shape=jax.ShapeDtypeStruct((k_splits, ab, ab), jnp.float32),
        grid_spec=pltpu.PrefetchScalarGridSpec(
            num_scalar_prefetch=0,
            grid=(k_splits, kpc),
            in_specs=[pl.BlockSpec((ab, tk), feat_map)],
            out_specs=pl.BlockSpec((None, ab, ab), lambda c, k: (c, 0, 0)),
        ),
        compiler_params=pltpu.CompilerParams(
            dimension_semantics=("parallel", "arbitrary"),
            vmem_limit_bytes=_VMEM_BUDGET_BYTES),
    )(feats)


def _style_mse_pallas(feats, target_gram, gram_denom, *, tk=None):
    """feats: (AB, CD), target_gram: (AB, AB) f32.
    Returns mean((feats @ feats.T / gram_denom - target_gram) ** 2)."""
    ab, cd = feats.shape
    if tk is None:
        # Resident f32 (AB, AB) buffers: Gram accumulator + target landing pad.
        tk = _choose_tk(ab, cd, feats.dtype.itemsize, resident_f32_ab2=2)
    kt = _cdiv(cd, tk)
    mask_cols = (cd % tk != 0)

    kernel = functools.partial(
        _gram_mse_kernel,
        inv_gram_denom=1.0 / float(gram_denom),
        inv_mse_denom=1.0 / float(ab * ab),
        cd=cd, tk=tk, mask_cols=mask_cols)

    loss = pl.pallas_call(
        kernel,
        out_shape=jax.ShapeDtypeStruct((1,), jnp.float32),
        grid_spec=pltpu.PrefetchScalarGridSpec(
            num_scalar_prefetch=0,
            grid=(kt,),
            in_specs=[
                pl.BlockSpec((ab, tk), lambda k: (0, k)),  # feature K tile (pipelined)
                pl.BlockSpec(memory_space=pl.ANY),         # target Gram stays in HBM
            ],
            out_specs=pl.BlockSpec(memory_space=pltpu.SMEM),   # scalar loss
            scratch_shapes=[
                pltpu.VMEM((ab, ab), jnp.float32),         # Gram accumulator
                pltpu.VMEM((ab, ab), jnp.float32),         # target landing buffer
                pltpu.SemaphoreType.DMA((1,)),
            ],
        ),
        compiler_params=pltpu.CompilerParams(
            dimension_semantics=("arbitrary",),
            vmem_limit_bytes=_VMEM_BUDGET_BYTES),
    )(feats, target_gram)
    return loss[0]


# --------------------------------------------------------------------------- #
# Functional entry points + module
# --------------------------------------------------------------------------- #
def _prep_features(x, compute_dtype):
    a, b, c, d = x.shape
    feats = x.reshape(a * b, c * d)
    if compute_dtype is not None:
        feats = feats.astype(compute_dtype)
    elif feats.dtype == jnp.float32:
        # Stream at half the HBM bytes; MXU accumulation stays f32.
        feats = feats.astype(jnp.bfloat16)
    return feats, a * b * c * d


def _default_k_splits(ab, cd, tk_hint):
    # Split the K reduction over a leading "parallel" grid axis only when the
    # problem is compute-bound enough (big AB) and the feature stream dominates
    # the extra partial-Gram writeback.  Intended for dual-TensorCore chips
    # (v7x); on single-core chips the split is just a harmless serial loop.
    return 2 if (ab >= 256 and cd >= 8 * ab and cd >= 2 * tk_hint) else 1


@functools.partial(jax.jit, static_argnames=("compute_dtype", "tk", "k_splits"))
def gram_matrix(x, *, compute_dtype=None, tk=None, k_splits=None):
    """Pallas-backed equivalent of the PyTorch gram_matrix()."""
    feats, gram_denom = _prep_features(x, compute_dtype)
    ab, cd = feats.shape
    tk_eff = tk if tk is not None else _choose_tk(ab, cd, feats.dtype.itemsize, 2)
    if k_splits is None:
        k_splits = _default_k_splits(ab, cd, tk_eff)
    partials = _gram_partials_pallas(feats, gram_denom, tk=tk_eff, k_splits=k_splits)
    return jnp.sum(partials, axis=0)


@functools.partial(jax.jit, static_argnames=("compute_dtype", "tk", "k_splits"))
def style_loss(x, target_gram, *, compute_dtype=None, tk=None, k_splits=None):
    """mean((gram_matrix(x) - target_gram) ** 2), Gram computed on-chip."""
    feats, gram_denom = _prep_features(x, compute_dtype)
    ab, cd = feats.shape
    target_gram = jnp.asarray(target_gram, jnp.float32)
    tk_eff = tk if tk is not None else _choose_tk(ab, cd, feats.dtype.itemsize, 2)
    if k_splits is None:
        k_splits = _default_k_splits(ab, cd, tk_eff)
    if k_splits > 1:
        # Partial-Gram path (dual-core K split); tiny (AB, AB) epilogue in XLA.
        G = jnp.sum(
            _gram_partials_pallas(feats, gram_denom, tk=tk_eff, k_splits=k_splits),
            axis=0)
        return jnp.mean(jnp.square(G - target_gram))
    # Fused path: the Gram never leaves VMEM, only the scalar loss does.
    return _style_mse_pallas(feats, target_gram, gram_denom, tk=tk_eff)


class StyleLoss:
    """JAX/Pallas port of the PyTorch StyleLoss module: __call__(x) returns x
    unchanged and stores self.loss = mse(gram_matrix(x), gram_matrix(target))."""

    def __init__(self, target_feature):
        self.target = gram_matrix(target_feature)   # f32 Gram of the target
        self.loss = None

    def __call__(self, x):
        self.loss = style_loss(x, self.target)
        return x


# --------------------------------------------------------------------------- #
# Self-test
# --------------------------------------------------------------------------- #
if __name__ == "__main__":
    key = jax.random.PRNGKey(0)
    k1, k2, k3, k4 = jax.random.split(key, 4)

    # Pure-JAX references (not part of the kernels).
    def ref_gram(t, dtype=None):
        a, b, c, d = t.shape
        f = t.reshape(a * b, c * d)
        if dtype is not None:
            f = f.astype(dtype)
        return jnp.dot(f, f.T, preferred_element_type=jnp.float32) / (a * b * c * d)

    def ref_loss(x, t, dtype=None):
        return jnp.mean((ref_gram(x, dtype) - ref_gram(t, dtype)) ** 2)

    # 1) Module-level check at the spec shape (NCHW 2,4,16,16), default bf16 stream.
    target_feature = jax.random.normal(k1, (2, 4, 16, 16), dtype=jnp.float32)
    x = jax.random.normal(k2, (2, 4, 16, 16), dtype=jnp.float32)

    module = StyleLoss(target_feature)
    out = jax.block_until_ready(module(x))
    loss = jax.block_until_ready(module.loss)

    assert out.shape == x.shape and bool(jnp.all(out == x))
    # Tight check vs. a reference on the same numeric path (bf16 stream, f32 accum).
    assert jnp.allclose(module.target, ref_gram(target_feature, jnp.bfloat16),
                        rtol=1e-3, atol=1e-5)
    assert jnp.allclose(loss, ref_loss(x, target_feature, jnp.bfloat16),
                        rtol=1e-3, atol=1e-6)
    # Loose check vs. the full-f32 reference (bf16 input rounding only).
    assert jnp.allclose(loss, ref_loss(x, target_feature), rtol=5e-2, atol=1e-5)

    # 2) Full-f32 path, tight check.
    g32 = jax.block_until_ready(gram_matrix(target_feature, compute_dtype=jnp.float32))
    l32 = jax.block_until_ready(style_loss(x, g32, compute_dtype=jnp.float32))
    assert jnp.allclose(g32, ref_gram(target_feature), rtol=1e-4, atol=1e-5)
    assert jnp.allclose(l32, ref_loss(x, target_feature), rtol=1e-4, atol=1e-6)

    # 3) Ragged CD (not a multiple of 128) + multi-K-tile + K-split paths.
    t2 = jax.random.normal(k3, (1, 8, 10, 30), dtype=jnp.float32)   # ab=8, cd=300
    x2 = jax.random.normal(k4, (1, 8, 10, 30), dtype=jnp.float32)
    g2_ref = ref_gram(t2)
    g2 = jax.block_until_ready(
        gram_matrix(t2, compute_dtype=jnp.float32, tk=128, k_splits=2))
    assert jnp.allclose(g2, g2_ref, rtol=1e-4, atol=1e-5)
    l2_fused = jax.block_until_ready(
        style_loss(x2, g2_ref, compute_dtype=jnp.float32, tk=128, k_splits=1))
    l2_split = jax.block_until_ready(
        style_loss(x2, g2_ref, compute_dtype=jnp.float32, tk=128, k_splits=2))
    l2_ref = ref_loss(x2, t2)
    assert jnp.allclose(l2_fused, l2_ref, rtol=1e-4, atol=1e-6)
    assert jnp.allclose(l2_split, l2_ref, rtol=1e-4, atol=1e-6)

    print("KERNEL_OK")
</pallas_src>

<mosaic_0001>
module attributes {stable_mosaic.version = 11 : i64} {
  func.func @_gram_partial_kernel(%arg0: i32, %arg1: i32, %arg2: memref<8x256xbf16, #tpu.memory_space<vmem>>, %arg3: memref<1x8x8xf32, #tpu.memory_space<vmem>>) attributes {dimension_semantics = [#tpu.dimension_semantics<parallel>, #tpu.dimension_semantics<arbitrary>], iteration_bounds = array<i64: 1, 1>, scalar_prefetch = 0 : i64, scratch_operands = 0 : i64, tpu.core_type = #tpu.core_type<tc>, window_params = [{transform_indices = @transform_0, window_bounds = array<i64: 8, 256>}, {transform_indices = @transform_1, window_bounds = array<i64: 1, 8, 8>}]} {
    %c0_i32 = arith.constant 0 : i32
    %0 = arith.cmpi eq, %arg1, %c0_i32 : i32
    %1 = arith.extui %0 : i1 to i32
    %c0_i32_0 = arith.constant 0 : i32
    %2 = arith.cmpi ne, %1, %c0_i32_0 : i32
    scf.if %2 {
      %cst_10 = arith.constant 0.000000e+00 : f32
      %14 = vector.broadcast %cst_10 : f32 to vector<8x8xf32>
      %c0_11 = arith.constant 0 : index
      %c0_12 = arith.constant 0 : index
      %c0_13 = arith.constant 0 : index
      %15 = vector.load %arg3[%c0_11, %c0_12, %c0_13] : memref<1x8x8xf32, #tpu.memory_space<vmem>>, vector<1x8x8xf32>
      %16 = vector.shape_cast %15 : vector<1x8x8xf32> to vector<8x8xf32>
      %17 = vector.shape_cast %14 : vector<8x8xf32> to vector<1x8x8xf32>
      tpu.vector_store %arg3[%c0_11, %c0_12, %c0_13], %17 {strides = array<i32>} : memref<1x8x8xf32, #tpu.memory_space<vmem>>, vector<1x8x8xf32>,
    } else {
    }
    %c0 = arith.constant 0 : index
    %c0_1 = arith.constant 0 : index
    %3 = vector.load %arg2[%c0, %c0_1] : memref<8x256xbf16, #tpu.memory_space<vmem>>, vector<8x256xbf16>
    %c0_2 = arith.constant 0 : index
    %c0_3 = arith.constant 0 : index
    %c0_4 = arith.constant 0 : index
    %4 = vector.load %arg3[%c0_2, %c0_3, %c0_4] : memref<1x8x8xf32, #tpu.memory_space<vmem>>, vector<1x8x8xf32>
    %5 = vector.shape_cast %4 : vector<1x8x8xf32> to vector<8x8xf32>
    %cst = arith.constant dense<0.000000e+00> : vector<8x8xf32>
    %6 = tpu.matmul %3, %3, %cst {dimension_numbers = #tpu.dot_dimension_numbers<[1], [1], [0], [0], [0, 0, 1, 0], [], []>} : vector<8x256xbf16>, vector<8x256xbf16>, vector<8x8xf32> -> vector<8x8xf32>
    %7 = arith.addf %5, %6 : vector<8x8xf32>
    %c0_5 = arith.constant 0 : index
    %c0_6 = arith.constant 0 : index
    %c0_7 = arith.constant 0 : index
    %8 = vector.load %arg3[%c0_5, %c0_6, %c0_7] : memref<1x8x8xf32, #tpu.memory_space<vmem>>, vector<1x8x8xf32>
    %9 = vector.shape_cast %8 : vector<1x8x8xf32> to vector<8x8xf32>
    %10 = vector.shape_cast %7 : vector<8x8xf32> to vector<1x8x8xf32>
    tpu.vector_store %arg3[%c0_5, %c0_6, %c0_7], %10 {strides = array<i32>} : memref<1x8x8xf32, #tpu.memory_space<vmem>>, vector<1x8x8xf32>,
    %c0_i32_8 = arith.constant 0 : i32
    %11 = arith.cmpi eq, %arg1, %c0_i32_8 : i32
    %12 = arith.extui %11 : i1 to i32
    %c0_i32_9 = arith.constant 0 : i32
    %13 = arith.cmpi ne, %12, %c0_i32_9 : i32
    scf.if %13 {
      %c0_10 = arith.constant 0 : index
      %c0_11 = arith.constant 0 : index
      %c0_12 = arith.constant 0 : index
      %14 = vector.load %arg3[%c0_10, %c0_11, %c0_12] : memref<1x8x8xf32, #tpu.memory_space<vmem>>, vector<1x8x8xf32>
      %15 = vector.shape_cast %14 : vector<1x8x8xf32> to vector<8x8xf32>
      %cst_13 = arith.constant 4.8828125E-4 : f32
      %16 = vector.broadcast %cst_13 : f32 to vector<8x8xf32>
      %17 = arith.mulf %15, %16 : vector<8x8xf32>
      %c0_14 = arith.constant 0 : index
      %c0_15 = arith.constant 0 : index
      %c0_16 = arith.constant 0 : index
      %18 = vector.load %arg3[%c0_14, %c0_15, %c0_16] : memref<1x8x8xf32, #tpu.memory_space<vmem>>, vector<1x8x8xf32>
      %19 = vector.shape_cast %18 : vector<1x8x8xf32> to vector<8x8xf32>
      %20 = vector.shape_cast %17 : vector<8x8xf32> to vector<1x8x8xf32>
      tpu.vector_store %arg3[%c0_14, %c0_15, %c0_16], %20 {strides = array<i32>} : memref<1x8x8xf32, #tpu.memory_space<vmem>>, vector<1x8x8xf32>,
    } else {
    }
    return
  }
  func.func @transform_0(%arg0: i32, %arg1: i32) -> (i32, i32) {
    %c1_i32 = arith.constant 1 : i32
    %0 = arith.muli %arg0, %c1_i32 : i32
    %1 = arith.addi %0, %arg1 : i32
    %c0_i32 = arith.constant 0 : i32
    %2 = arith.minsi %1, %c0_i32 : i32
    %c0_i32_0 = arith.constant 0 : i32
    %c0_i32_1 = arith.constant 0 : i32
    return %c0_i32_0, %2 : i32, i32
  }
  func.func @transform_1(%arg0: i32, %arg1: i32) -> (i32, i32, i32) {
    %c0_i32 = arith.constant 0 : i32
    %c0_i32_0 = arith.constant 0 : i32
    %c0_i32_1 = arith.constant 0 : i32
    return %arg0, %c0_i32, %c0_i32_0 : i32, i32, i32
  }
}

</mosaic_0001>

<llo_original>
// kernel: gram_matrix.1
$region0: #{gram_matrix.1}
  #allocation0 [shape = 'u32[]', space=smem, size = 0x4, offset = 0x4, fixed_abs, tag = 'smem constant byte address 0x4 - core index']
  #allocation1 [shape = 'u32[72,128]{1,0:T(1,128)}', space=vmem, size = 0x9000, scoped, tag = 'internal scratch']
  %s0 = inlined_call_operand.vmem [shape: bf16[8,256], index: 0, kind: input, shape index: {}]
  %s1 = inlined_call_operand.hbm [shape: f32[1,8,8], index: 1, kind: output, shape index: {}]
  %s2 = sld [smem:[#allocation0]]
  $region22: #{gram_matrix.1} parent=0
    _
  %s4 = ssub.s32 1, %s2
  %s5 = scalar_select 0, %s4, %s2
  $region1: #{gram_matrix.1} parent=0
    #allocation2 [shape = 'u8[4096]{0}', space=vmem, size = 0x1000, scoped, tag = 'output window, operand 0, single buffered']
    #allocation3 [shape = 's32[1]{0}', space=sflag, size = 0x4, scoped, tag = 'scoped memory for gram_matrix.1']
    %6 = vsyncpa [#allocation3], 0
    // Predicated region
    $region2: #{gram_matrix.1} parent=1 // pred_check
      _
    $region3: #{gram_matrix.1} parent=1 // pred_check_branch
      %8 = sbr.rel (0) target = $region5
    $region4: #{gram_matrix.1} parent=1 // pred_region
      %s9 = sadd.s32 0, 0
      %p10 = scmp.lt.s32.totalorder %s9, 0
      %s11 = scalar_select %p10, %s9, 0
      %s12 = smul.u32 2, %s11
      %p13 = scmp.lt.s32.totalorder %s12, 1
      %s14 = scalar_select %p13, %s12, 1
      %s15 = smul.addr %s14, 4
      %s16 = scalar_lea.vmem %s0, %s15
      %s17 = sadd.s32 0, 0
      %p18 = scmp.lt.s32.totalorder %s17, 0
      %s19 = scalar_select %p18, %s17, 0
      %s20 = smul.u32 2, %s19
    $region5: #{gram_matrix.1} parent=1 // pred_fallthru
      _
    %s21 = sadd.s32 0, 0
    %p22 = scmp.lt.s32.totalorder %s21, 0
    %s23 = scalar_select %p22, %s21, 0
    %s24 = smul.u32 2, %s23
    %p25 = scmp.lt.s32.totalorder %s24, 1
    %s26 = scalar_select %p25, %s24, 1
    %s27 = smul.addr %s26, 4
    %s28 = scalar_lea.vmem %s0, %s27
    %s29 = sadd.s32 0, 0
    %p30 = scmp.lt.s32.totalorder %s29, 0
    %s31 = scalar_select %p30, %s29, 0
    %s32 = smul.u32 2, %s31
    %p33 = scmp.lt.s32.totalorder %s32, 1
    %s34 = scalar_select %p33, %s32, 1
    %s35 = smul.addr %s34, 4
    %s36 = scalar_lea.vmem %s0, %s35
    %s37 = sadd.s32 0, 0
    %p38 = scmp.lt.s32.totalorder %s37, 0
    %s39 = scalar_select %p38, %s37, 0
    %s40 = smul.u32 2, %s39
    %p42 = scmp.eq.s32.totalorder 0, 0
    // Predicated region
    $region6: #{gram_matrix.1} parent=1 // pred_check
      %p43 = pneg %p42
    $region7: #{gram_matrix.1} parent=1 // pred_check_branch
      %45 = sbr.rel (%p43) target = $region9
    $region8: #{gram_matrix.1} parent=1 // pred_region
      %vm46 = vcmask 64512
      %47 = vst.msk [vmem:[#allocation2] sm:$0xff] %vm46, 0.0
    $region9: #{gram_matrix.1} parent=1 // pred_fallthru
      _
    %v48 = vld [vmem:[%s36] sm:$0xff]
    %v49 = vld [vmem:[#allocation2] sm:$0xff]
    %v51 = vunpack.c.l.b16 %v48
    %v52 = vunpack.c.h.b16 %v48
    %v53 = vpack.c.b16 %v51, %v51
    %v54 = vpack.c.b16 %v52, %v52
    %57 = vmatpush.bf16.xpose.msra.mxu0 0
    %58 = vmatpush.bf16.xpose.msra.mxu0 0
    %59 = vmatpush.bf16.xpose.msra.mxu0 0
    %60 = vmatpush.bf16.xpose.msra.mxu0 0
    %61 = vmatpush.bf16.xpose.msra.mxu0 0
    %62 = vmatpush.bf16.xpose.msra.mxu0 0
    %63 = vmatpush.bf16.xpose.msra.mxu0 0
    %64 = vmatpush.bf16.xpose.msra.mxu0 %v53
    %65 = vmatmul.bf16.gmra.mxu0 %v53
    %v66 = vpop.f32.mrf.mxu0
    %v67 = vadd.f32 0.0, %v66
    %v68 = vpop.f32.mrf.mxu0
    %69 = vdwg.mxu0
    %70 = vmatpush.bf16.xpose.msra.mxu0 0
    %71 = vmatpush.bf16.xpose.msra.mxu0 0
    %72 = vmatpush.bf16.xpose.msra.mxu0 0
    %73 = vmatpush.bf16.xpose.msra.mxu0 0
    %74 = vmatpush.bf16.xpose.msra.mxu0 0
    %75 = vmatpush.bf16.xpose.msra.mxu0 0
    %76 = vmatpush.bf16.xpose.msra.mxu0 0
    %77 = vmatpush.bf16.xpose.msra.mxu0 %v54
    %78 = vmatmul.bf16.gmra.mxu0 %v54
    %v79 = vpop.f32.mrf.mxu0
    %v80 = vadd.f32 %v67, %v79
    %v81 = vpop.f32.mrf.mxu0
    %82 = vdwg.mxu0
    %v83 = vadd.f32 %v49, %v80
    %vm84 = vcmask 64512
    %85 = vst.msk [vmem:[#allocation2] sm:$0xff] %vm84, %v83
    // Predicated region
    $region10: #{gram_matrix.1} parent=1 // pred_check
      %p86 = pneg %p42
    $region11: #{gram_matrix.1} parent=1 // pred_check_branch
      %88 = sbr.rel (%p86) target = $region13
    $region12: #{gram_matrix.1} parent=1 // pred_region
      %v89 = vld [vmem:[#allocation2] sm:$0xff]
      %v90 = vmul.f32 %v89, 0.00048828125
      %91 = vst.msk [vmem:[#allocation2] sm:$0xff] %vm84, %v90
    $region13: #{gram_matrix.1} parent=1 // pred_fallthru
      _
    // Predicated region
    $region14: #{gram_matrix.1} parent=1 // pred_check
      _
    $region15: #{gram_matrix.1} parent=1 // pred_check_branch
      %93 = sbr.rel (0) target = $region17
    $region16: #{gram_matrix.1} parent=1 // pred_region
      %95 = vsyncadd [#allocation3], 0
      %s97 = sshll.u32 [#allocation2], 4
      %s98 = int_to_ptr.vmem [resolvable:$true] %s97
      %s99 = sshll.u32 %s1, 4
      %s100 = int_to_ptr.hbm [resolvable:$true] %s99
      %102 = dma.vmem_to_hbm [thread:$0]  %s98, 128, %s100, [#allocation3]
    $region17: #{gram_matrix.1} parent=1 // pred_fallthru
      _
    // Predicated region
    $region18: #{gram_matrix.1} parent=1 // pred_check
      _
    $region19: #{gram_matrix.1} parent=1 // pred_check_branch
      %104 = sbr.rel (0) target = $region21
    $region20: #{gram_matrix.1} parent=1 // pred_region
      %106 = dma.done [#allocation3], 128
    $region21: #{gram_matrix.1} parent=1 // pred_fallthru
      _
    %107 = vsyncpa [#allocation3], 1

</llo_original>
